<compile_context>
chip_gen: v5e
topology: v5e:2x2
jax: 0.10.0
libtpu: 0.0.40
codegen_flags: <defaults>
</compile_context>

<pallas_src>
import functools

import jax
import jax.numpy as jnp
from jax.experimental import pallas as pl
from jax.experimental.pallas import tpu as pltpu


def _round_up(x, m):
    return ((x + m - 1) // m) * m


def _trojan_kernel(feat_cols, thrd_ref, x_ref, w_ref, b_ref, feat_ref, edge_ref):
    """One row tile: fused (TM, nfeat) @ (nfeat, feat_pad+edge_pad) + bias, then split.

    feat_cols (== feat_pad) is a 128-aligned static closure constant, so both
    slices are lane-aligned full-vreg accesses. thrd lives in SMEM (runtime scalar).
    """
    # Single MXU pass for both linears, f32 accumulation.
    y = jnp.dot(x_ref[...], w_ref[...], preferred_element_type=jnp.float32)
    y = y + b_ref[...]

    # feat = first feat_pad lanes.
    feat_ref[...] = y[:, :feat_cols].astype(feat_ref.dtype)

    # edge_weight = GradWhere(edge_logits, thrd) forward; exact 0/1 so bf16 is lossless.
    thrd = thrd_ref[0, 0]
    edge_ref[...] = (y[:, feat_cols:] > thrd).astype(edge_ref.dtype)


def prepare_fused_params(w_feat, b_feat, w_edge, b_edge, *,
                         compute_dtype=jnp.bfloat16):
    """Build the fused / lane-padded weight & bias ONCE per parameter set.

    w_feat: (nfeat, nout*nfeat), w_edge: (nfeat, nout*(nout-1)/2) — stored
    pre-transposed (in, out) == PyTorch weight.T so the kernel does plain x @ W.
    """
    nfeat, feat_out = w_feat.shape
    edge_out = w_edge.shape[1]
    feat_pad = _round_up(feat_out, 128)
    edge_pad = _round_up(edge_out, 128)
    total_out = feat_pad + edge_pad

    w_all = jnp.zeros((nfeat, total_out), dtype=compute_dtype)
    w_all = w_all.at[:, :feat_out].set(w_feat.astype(compute_dtype))
    w_all = w_all.at[:, feat_pad:feat_pad + edge_out].set(w_edge.astype(compute_dtype))

    b_all = jnp.zeros((1, total_out), dtype=jnp.float32)
    b_all = b_all.at[0, :feat_out].set(b_feat.astype(jnp.float32))
    b_all = b_all.at[0, feat_pad:feat_pad + edge_out].set(b_edge.astype(jnp.float32))

    return {
        "w_all": w_all, "b_all": b_all,
        "nfeat": nfeat, "feat_out": feat_out, "edge_out": edge_out,
        "feat_pad": feat_pad, "edge_pad": edge_pad,
        "compute_dtype": compute_dtype,
    }


def graph_trojan_net_forward_fused(x, fused, thrd, *,
                                   tile_rows=2048,
                                   edge_dtype=jnp.bfloat16,
                                   return_padded=False):
    """Forward pass using prepared fused params.

    x: (N, nfeat). Returns (feat (N, nout*nfeat) f32, edge_weight bf16 0/1 values).
    With return_padded=True the lane/row-padded device buffers are returned directly
    (no post-call slice copies); padded edge lanes carry zero logits, so they are
    0 for thrd > 0 but 1 for thrd <= 0 — slice before consuming in that regime.
    """
    n, nfeat = x.shape
    assert nfeat == fused["nfeat"]
    feat_out, edge_out = fused["feat_out"], fused["edge_out"]
    feat_pad, edge_pad = fused["feat_pad"], fused["edge_pad"]
    total_out = feat_pad + edge_pad
    compute_dtype = fused["compute_dtype"]

    # Row tiling. 16-row alignment satisfies sublane packing for both f32 and
    # bf16 tiles; pad N up to whole tiles and (optionally) slice padding off after.
    row_align = 16
    tm = _round_up(min(int(tile_rows), _round_up(n, row_align)), row_align)
    n_pad = _round_up(n, tm)

    x_p = x.astype(compute_dtype)
    if n_pad != n:
        x_p = jnp.pad(x_p, ((0, n_pad - n), (0, 0)))

    thrd_arr = jnp.full((1, 1), thrd, dtype=jnp.float32)  # runtime SMEM scalar

    in_item = jnp.dtype(compute_dtype).itemsize
    edge_item = jnp.dtype(edge_dtype).itemsize
    cost = pl.CostEstimate(
        flops=2 * n_pad * nfeat * total_out,
        transcendentals=0,
        bytes_accessed=(n_pad * nfeat * in_item            # x
                        + nfeat * total_out * in_item      # fused weight
                        + total_out * 4                    # bias
                        + n_pad * feat_pad * 4             # feat out
                        + n_pad * edge_pad * edge_item),   # edge out
    )

    kernel = functools.partial(_trojan_kernel, feat_pad)

    feat_p, edge_p = pl.pallas_call(
        kernel,
        out_shape=(
            jax.ShapeDtypeStruct((n_pad, feat_pad), jnp.float32),
            jax.ShapeDtypeStruct((n_pad, edge_pad), edge_dtype),
        ),
        grid=(n_pad // tm,),
        in_specs=[
            pl.BlockSpec(memory_space=pltpu.MemorySpace.SMEM),    # thrd scalar
            pl.BlockSpec((tm, nfeat), lambda i: (i, 0)),          # x row tile
            pl.BlockSpec((nfeat, total_out), lambda i: (0, 0)),   # fused weight (resident)
            pl.BlockSpec((1, total_out), lambda i: (0, 0)),       # fused bias (resident)
        ],
        out_specs=(
            pl.BlockSpec((tm, feat_pad), lambda i: (i, 0)),
            pl.BlockSpec((tm, edge_pad), lambda i: (i, 0)),
        ),
        compiler_params=pltpu.CompilerParams(
            dimension_semantics=("parallel",),   # shards the row sweep across TCs on v7x
        ),
        cost_estimate=cost,
    )(thrd_arr, x_p, w_all := fused["w_all"], fused["b_all"])

    if return_padded:
        return feat_p, edge_p

    # Slice only when padding actually exists (feat_out is often already 128-aligned).
    feat = feat_p if (n_pad == n and feat_pad == feat_out) else feat_p[:n, :feat_out]
    edge = edge_p if (n_pad == n and edge_pad == edge_out) else edge_p[:n, :edge_out]
    return feat, edge


def graph_trojan_net_forward(x, w_feat, b_feat, w_edge, b_edge, thrd, *,
                             tile_rows=2048, compute_dtype=jnp.bfloat16,
                             edge_dtype=jnp.bfloat16, return_padded=False):
    """Convenience one-shot wrapper. For repeated calls (per-minibatch training),
    call prepare_fused_params() once and use graph_trojan_net_forward_fused()."""
    fused = prepare_fused_params(w_feat, b_feat, w_edge, b_edge,
                                 compute_dtype=compute_dtype)
    return graph_trojan_net_forward_fused(x, fused, thrd, tile_rows=tile_rows,
                                          edge_dtype=edge_dtype,
                                          return_padded=return_padded)


def init_params(key, nfeat, nout):
    """Deterministic init mimicking nn.Linear's U(-1/sqrt(in), 1/sqrt(in))."""
    feat_out = nout * nfeat
    edge_out = (nout * (nout - 1)) // 2
    k1, k2, k3, k4 = jax.random.split(key, 4)
    bound = 1.0 / jnp.sqrt(jnp.float32(nfeat))
    # Stored as (in, out) == PyTorch weight.T
    w_feat = jax.random.uniform(k1, (nfeat, feat_out), jnp.float32, -bound, bound)
    b_feat = jax.random.uniform(k2, (feat_out,), jnp.float32, -bound, bound)
    w_edge = jax.random.uniform(k3, (nfeat, edge_out), jnp.float32, -bound, bound)
    b_edge = jax.random.uniform(k4, (edge_out,), jnp.float32, -bound, bound)
    return w_feat, b_feat, w_edge, b_edge


# TODO(synk): the hidden nn.Sequential stack is identity at the module defaults
# (layernum=1, dropout=0.0); extra Linear+ReLU layers would need a second fused
# matmul stage before the split and are not implemented here.

if __name__ == "__main__":
    key = jax.random.PRNGKey(0)
    k_x, k_p = jax.random.split(key)

    # Small shapes consistent with the module: N nodes, nfeat features,
    # nout trigger nodes -> feat out = nout*nfeat, edge out = nout*(nout-1)/2.
    N, NFEAT, NOUT = 8, 32, 4
    THRD = 0.5

    x = jax.random.normal(k_x, (N, NFEAT), dtype=jnp.float32)
    w_feat, b_feat, w_edge, b_edge = init_params(k_p, NFEAT, NOUT)

    # 1) Default fast path (bf16 inputs / bf16 edge output) — exercise it once.
    fused_bf16 = prepare_fused_params(w_feat, b_feat, w_edge, b_edge)
    feat_fast, edge_fast = graph_trojan_net_forward_fused(x, fused_bf16, THRD)
    jax.block_until_ready((feat_fast, edge_fast))

    # 2) f32 compute path for a tight numerical check against the pure-JAX reference
    #    (bf16 rounding could flip edge bits for logits near thrd).
    fused_f32 = prepare_fused_params(w_feat, b_feat, w_edge, b_edge,
                                     compute_dtype=jnp.float32)
    feat, edge_w = graph_trojan_net_forward_fused(x, fused_f32, THRD)
    feat = jax.block_until_ready(feat)
    edge_w = jax.block_until_ready(edge_w)

    feat_ref = x @ w_feat + b_feat
    edge_logits = x @ w_edge + b_edge
    edge_ref = jnp.where(edge_logits > THRD, 1.0, 0.0)

    assert feat.shape == (N, NOUT * NFEAT)
    assert edge_w.shape == (N, (NOUT * (NOUT - 1)) // 2)
    assert jnp.allclose(feat, feat_ref, atol=1e-5, rtol=1e-5)
    assert jnp.array_equal(edge_w.astype(jnp.float32), edge_ref)

    print("KERNEL_OK")
</pallas_src>

<mosaic_0001>
module attributes {stable_mosaic.version = 11 : i64} {
  func.func @_trojan_kernel(%arg0: i32, %arg1: memref<1x1xf32, #tpu.memory_space<smem>>, %arg2: memref<16x32xbf16, #tpu.memory_space<vmem>>, %arg3: memref<32x256xbf16, #tpu.memory_space<vmem>>, %arg4: memref<1x256xf32, #tpu.memory_space<vmem>>, %arg5: memref<16x128xf32, #tpu.memory_space<vmem>>, %arg6: memref<16x128xbf16, #tpu.memory_space<vmem>>) attributes {dimension_semantics = [#tpu.dimension_semantics<parallel>], iteration_bounds = array<i64: 1>, scalar_prefetch = 0 : i64, scratch_operands = 0 : i64, tpu.core_type = #tpu.core_type<tc>, window_params = [{transform_indices = @transform_0, window_bounds = array<i64: 1, 1>}, {transform_indices = @transform_1, window_bounds = array<i64: 16, 32>}, {pipeline_mode = #tpu.pipeline_mode<synchronous>, transform_indices = @transform_2, window_bounds = array<i64: 32, 256>}, {pipeline_mode = #tpu.pipeline_mode<synchronous>, transform_indices = @transform_3, window_bounds = array<i64: 1, 256>}, {transform_indices = @transform_4, window_bounds = array<i64: 16, 128>}, {transform_indices = @transform_5, window_bounds = array<i64: 16, 128>}]} {
    %c0 = arith.constant 0 : index
    %c0_0 = arith.constant 0 : index
    %0 = vector.load %arg2[%c0, %c0_0] : memref<16x32xbf16, #tpu.memory_space<vmem>>, vector<16x32xbf16>
    %c0_1 = arith.constant 0 : index
    %c0_2 = arith.constant 0 : index
    %1 = vector.load %arg3[%c0_1, %c0_2] : memref<32x256xbf16, #tpu.memory_space<vmem>>, vector<32x256xbf16>
    %cst = arith.constant dense<0.000000e+00> : vector<16x256xf32>
    %2 = tpu.matmul %0, %1, %cst {dimension_numbers = #tpu.dot_dimension_numbers<[1], [0], [0], [1], [0, 0, 1, 1], [], []>} : vector<16x32xbf16>, vector<32x256xbf16>, vector<16x256xf32> -> vector<16x256xf32>
    %c0_3 = arith.constant 0 : index
    %c0_4 = arith.constant 0 : index
    %3 = vector.load %arg4[%c0_3, %c0_4] : memref<1x256xf32, #tpu.memory_space<vmem>>, vector<1x256xf32>
    %4 = vector.broadcast %3 : vector<1x256xf32> to vector<16x256xf32>
    %5 = arith.addf %2, %4 : vector<16x256xf32>
    %6 = vector.extract_strided_slice %5 {offsets = [0, 0], sizes = [16, 128], strides = [1, 1]} : vector<16x256xf32> to vector<16x128xf32>
    %c0_5 = arith.constant 0 : index
    %c0_6 = arith.constant 0 : index
    %7 = vector.load %arg5[%c0_5, %c0_6] : memref<16x128xf32, #tpu.memory_space<vmem>>, vector<16x128xf32>
    tpu.vector_store %arg5[%c0_5, %c0_6], %6 {strides = array<i32>} : memref<16x128xf32, #tpu.memory_space<vmem>>, vector<16x128xf32>,
    %c0_7 = arith.constant 0 : index
    %c0_8 = arith.constant 0 : index
    %8 = memref.load %arg1[%c0_7, %c0_8] : memref<1x1xf32, #tpu.memory_space<smem>>
    %9 = vector.extract_strided_slice %5 {offsets = [0, 128], sizes = [16, 128], strides = [1, 1]} : vector<16x256xf32> to vector<16x128xf32>
    %10 = vector.broadcast %8 : f32 to vector<16x128xf32>
    %11 = arith.cmpf ogt, %9, %10 : vector<16x128xf32>
    %12 = arith.extui %11 : vector<16x128xi1> to vector<16x128xi32>
    %13 = arith.sitofp %12 : vector<16x128xi32> to vector<16x128xf32>
    %14 = arith.truncf %13 : vector<16x128xf32> to vector<16x128xbf16>
    %c0_9 = arith.constant 0 : index
    %c0_10 = arith.constant 0 : index
    %15 = vector.load %arg6[%c0_9, %c0_10] : memref<16x128xbf16, #tpu.memory_space<vmem>>, vector<16x128xbf16>
    tpu.vector_store %arg6[%c0_9, %c0_10], %14 {strides = array<i32>} : memref<16x128xbf16, #tpu.memory_space<vmem>>, vector<16x128xbf16>,
    return
  }
  func.func @transform_0(%arg0: i32) -> (i32, i32) {
    %c0_i32 = arith.constant 0 : i32
    %c0_i32_0 = arith.constant 0 : i32
    %c0_i32_1 = arith.constant 0 : i32
    return %c0_i32, %c0_i32_0 : i32, i32
  }
  func.func @transform_1(%arg0: i32) -> (i32, i32) {
    %c0_i32 = arith.constant 0 : i32
    %c0_i32_0 = arith.constant 0 : i32
    return %arg0, %c0_i32 : i32, i32
  }
  func.func @transform_2(%arg0: i32) -> (i32, i32) {
    %c0_i32 = arith.constant 0 : i32
    %c0_i32_0 = arith.constant 0 : i32
    %c0_i32_1 = arith.constant 0 : i32
    return %c0_i32, %c0_i32_0 : i32, i32
  }
  func.func @transform_3(%arg0: i32) -> (i32, i32) {
    %c0_i32 = arith.constant 0 : i32
    %c0_i32_0 = arith.constant 0 : i32
    %c0_i32_1 = arith.constant 0 : i32
    return %c0_i32, %c0_i32_0 : i32, i32
  }
  func.func @transform_4(%arg0: i32) -> (i32, i32) {
    %c0_i32 = arith.constant 0 : i32
    %c0_i32_0 = arith.constant 0 : i32
    return %arg0, %c0_i32 : i32, i32
  }
  func.func @transform_5(%arg0: i32) -> (i32, i32) {
    %c0_i32 = arith.constant 0 : i32
    %c0_i32_0 = arith.constant 0 : i32
    return %arg0, %c0_i32 : i32, i32
  }
}

</mosaic_0001>

<llo_original>
// kernel: tpu_custom_call.1
$region0: #{tpu_custom_call.1}
  #allocation0 [shape = 'u32[]', space=smem, size = 0x4, offset = 0x4, fixed_abs, tag = 'smem constant byte address 0x4 - core index']
  #allocation1 [shape = 'u32[72,128]{1,0:T(1,128)}', space=vmem, size = 0x9000, scoped, tag = 'internal scratch']
  #allocation2 [shape = 'f32[1,1]{1,0:T(1,128)S(6)}', space=smem, size = 0x200, scoped, tag = 'scoped memory for tpu_custom_call.1']
  %s0 = inlined_call_operand.<no memory space> [shape: f32[1,1], index: 0, kind: input, shape index: {}]
  %s1 = inlined_call_operand.hbm [shape: bf16[16,32], index: 1, kind: input, shape index: {}]
  %s2 = inlined_call_operand.hbm [shape: bf16[32,256], index: 2, kind: input, shape index: {}]
  %s3 = inlined_call_operand.vmem [shape: f32[1,256], index: 3, kind: input, shape index: {}]
  %s4 = inlined_call_operand.hbm [shape: f32[16,128], index: 4, kind: output, shape index: {0}]
  %s5 = inlined_call_operand.hbm [shape: bf16[16,128], index: 5, kind: output, shape index: {1}]
  %6 = xla_tuple %s4, %s5
  %s7 = sld [smem:[#allocation0]]
  $region42: #{tpu_custom_call.1} parent=0
    _
  %s9 = ssub.s32 1, %s7
  %s10 = scalar_select 0, %s9, %s7
  %11 = sst [smem:[#allocation2]] %s0
  $region1: #{tpu_custom_call.1} parent=0
    #allocation3 [shape = 'u8[4096]{0}', space=vmem, size = 0x1000, scoped, tag = 'input window, operand 1, single buffered']
    #allocation4 [shape = 's32[1]{0}', space=sflag, size = 0x4, scoped, tag = 'scoped memory for tpu_custom_call.1']
    #allocation5 [shape = 's32[1]{0}', space=sflag, size = 0x4, scoped, tag = 'scoped memory for tpu_custom_call.1']
    #allocation6 [shape = 'u8[16384]{0}', space=vmem, size = 0x4000, scoped, tag = 'input window, operand 2, single buffered']
    #allocation7 [shape = 's32[1]{0}', space=sflag, size = 0x4, scoped, tag = 'scoped memory for tpu_custom_call.1']
    #allocation8 [shape = 'u8[8192]{0}', space=vmem, size = 0x2000, scoped, tag = 'output window, operand 0, single buffered']
    #allocation9 [shape = 'u8[4096]{0}', space=vmem, size = 0x1000, scoped, tag = 'output window, operand 1, single buffered']
    #allocation10 [shape = 's32[1]{0}', space=sflag, size = 0x4, scoped, tag = 'scoped memory for tpu_custom_call.1']
    %12 = vsyncpa [#allocation4], 0
    %13 = vsyncpa [#allocation7], 0
    %14 = vsyncpa [#allocation5], 0
    %15 = vsyncpa [#allocation10], 0
    // Predicated region
    $region2: #{tpu_custom_call.1} parent=1 // pred_check
      _
    $region3: #{tpu_custom_call.1} parent=1 // pred_check_branch
      %17 = sbr.rel (0) target = $region5
    $region4: #{tpu_custom_call.1} parent=1 // pred_region
      _
    $region5: #{tpu_custom_call.1} parent=1 // pred_fallthru
      _
    // Predicated region
    $region6: #{tpu_custom_call.1} parent=1 // pred_check
      _
    $region7: #{tpu_custom_call.1} parent=1 // pred_check_branch
      %19 = sbr.rel (0) target = $region9
    $region8: #{tpu_custom_call.1} parent=1 // pred_region
      %21 = vsyncadd [#allocation4], 0
      %s22 = sshll.u32 %s1, 4
      %s23 = int_to_ptr.hbm [resolvable:$true] %s22
      %s24 = sshll.u32 [#allocation3], 4
      %s25 = int_to_ptr.vmem [resolvable:$true] %s24
      %30 = dma.hbm_to_vmem [thread:$0]  %s23, 128, %s25, [#allocation4], 64, 64, 4
    $region9: #{tpu_custom_call.1} parent=1 // pred_fallthru
      _
    // Predicated region
    $region10: #{tpu_custom_call.1} parent=1 // pred_check
      _
    $region11: #{tpu_custom_call.1} parent=1 // pred_check_branch
      %32 = sbr.rel (0) target = $region13
    $region12: #{tpu_custom_call.1} parent=1 // pred_region
      %34 = vsyncadd [#allocation7], 0
      %s35 = sshll.u32 %s2, 4
      %s36 = int_to_ptr.hbm [resolvable:$true] %s35
      %s37 = sshll.u32 [#allocation6], 4
      %s38 = int_to_ptr.vmem [resolvable:$true] %s37
      %43 = dma.hbm_to_vmem [thread:$0]  %s36, 512, %s38, [#allocation7], 128, 128, 8
    $region13: #{tpu_custom_call.1} parent=1 // pred_fallthru
      _
    // Predicated region
    $region14: #{tpu_custom_call.1} parent=1 // pred_check
      _
    $region15: #{tpu_custom_call.1} parent=1 // pred_check_branch
      %45 = sbr.rel (0) target = $region17
    $region16: #{tpu_custom_call.1} parent=1 // pred_region
      _
    $region17: #{tpu_custom_call.1} parent=1 // pred_fallthru
      _
    // Predicated region
    $region18: #{tpu_custom_call.1} parent=1 // pred_check
      _
    $region19: #{tpu_custom_call.1} parent=1 // pred_check_branch
      %47 = sbr.rel (0) target = $region21
    $region20: #{tpu_custom_call.1} parent=1 // pred_region
      %49 = dma.done [#allocation4], 128
    $region21: #{tpu_custom_call.1} parent=1 // pred_fallthru
      _
    // Predicated region
    $region22: #{tpu_custom_call.1} parent=1 // pred_check
      _
    $region23: #{tpu_custom_call.1} parent=1 // pred_check_branch
      %51 = sbr.rel (0) target = $region25
    $region24: #{tpu_custom_call.1} parent=1 // pred_region
      %53 = dma.done [#allocation7], 512
    $region25: #{tpu_custom_call.1} parent=1 // pred_fallthru
      _
    %v55 = vld [vmem:[#allocation3] sm:$0xf]
    %v56 = vld [vmem:[#allocation3 + $0x4] sm:$0xf]
    %v57 = vld [vmem:[#allocation6] sm:$0xff]
    %v58 = vld [vmem:[#allocation6 + $0x8] sm:$0xff]
    %v59 = vld [vmem:[#allocation6 + $0x10] sm:$0xff]
    %v60 = vld [vmem:[#allocation6 + $0x18] sm:$0xff]
    %v61 = vld [vmem:[%s3] sm:$0x3]
    %v63 = vperm.slane %v61, 0
    %v64 = vperm.slane %v61, 1
    %v69 = vunpack.c.l.b16 %v55
    %v70 = vunpack.c.l.b16 %v56
    %v71 = vpack.c.b16 %v70, %v69
    %v76 = vunpack.c.l.b16 %v57
    %v77 = vunpack.c.h.b16 %v57
    %v78 = vunpack.c.l.b16 %v58
    %v79 = vunpack.c.h.b16 %v58
    %v80 = vunpack.c.l.b16 %v59
    %v81 = vunpack.c.h.b16 %v59
    %v82 = vunpack.c.l.b16 %v60
    %v83 = vunpack.c.h.b16 %v60
    %v84 = vpack.c.b16 %v78, %v76
    %v85 = vpack.c.b16 %v79, %v77
    %v86 = vpack.c.b16 %v82, %v80
    %v87 = vpack.c.b16 %v83, %v81
    %vm92 = vcmask 261120
    %v94 = vsel %vm92, %v71, 0
    %96 = vmatpush.bf16.msra.mxu0 0
    %97 = vmatpush.bf16.msra.mxu0 0
    %98 = vmatpush.bf16.msra.mxu0 0
    %99 = vmatpush.bf16.msra.mxu0 0
    %100 = vmatpush.bf16.msra.mxu0 0
    %101 = vmatpush.bf16.msra.mxu0 0
    %102 = vmatpush.bf16.msra.mxu0 %v86
    %103 = vmatpush.bf16.msra.mxu0 %v84
    %104 = vmatmul.bf16.gmra.mxu0 %v94
    %v105 = vpop.f32.mrf.mxu0
    %v106 = vadd.f32 %v63, %v105
    %v107 = vpop.f32.mrf.mxu0
    %v108 = vadd.f32 %v63, %v107
    %109 = vdwg.mxu0
    %110 = vmatpush.bf16.msra.mxu0 0
    %111 = vmatpush.bf16.msra.mxu0 0
    %112 = vmatpush.bf16.msra.mxu0 0
    %113 = vmatpush.bf16.msra.mxu0 0
    %114 = vmatpush.bf16.msra.mxu0 0
    %115 = vmatpush.bf16.msra.mxu0 0
    %116 = vmatpush.bf16.msra.mxu0 %v87
    %117 = vmatpush.bf16.msra.mxu0 %v85
    %118 = vmatmul.bf16.gmra.mxu0 %v94
    %v119 = vpop.f32.mrf.mxu0
    %v120 = vadd.f32 %v64, %v119
    %v121 = vpop.f32.mrf.mxu0
    %v122 = vadd.f32 %v64, %v121
    %123 = vdwg.mxu0
    %124 = vst [vmem:[#allocation8] sm:$0xff] %v106
    %125 = vst [vmem:[#allocation8 + $0x8] sm:$0xff] %v108
    %s126 = sld [smem:[#allocation2]]
    %v127 = vstv %s126
    %vm128 = vcmp.gt.f32.partialorder %v120, %v127
    %vm129 = vcmp.gt.f32.partialorder %v122, %v127
    %v130 = vsel %vm128, 1, 0
    %v131 = vsel %vm129, 1, 0
    %v132 = vcvt.s32.f32 %v130
    %v133 = vcvt.s32.f32 %v131
    %v134 = vpack.c.bf16 %v132, %v132
    %v135 = vpack.c.bf16 %v133, %v133
    %136 = vst [vmem:[#allocation9] sm:$0xf] %v134
    %137 = vst [vmem:[#allocation9 + $0x4] sm:$0xf] %v135
    // Predicated region
    $region26: #{tpu_custom_call.1} parent=1 // pred_check
      _
    $region27: #{tpu_custom_call.1} parent=1 // pred_check_branch
      %139 = sbr.rel (0) target = $region29
    $region28: #{tpu_custom_call.1} parent=1 // pred_region
      %141 = vsyncadd [#allocation5], 0
      %s142 = sshll.u32 [#allocation8], 4
      %s143 = int_to_ptr.vmem [resolvable:$true] %s142
      %s144 = sshll.u32 %s4, 4
      %s145 = int_to_ptr.hbm [resolvable:$true] %s144
      %150 = dma.vmem_to_hbm [thread:$0]  %s143, 256, %s145, [#allocation5], 128, 128, 8
    $region29: #{tpu_custom_call.1} parent=1 // pred_fallthru
      _
    // Predicated region
    $region30: #{tpu_custom_call.1} parent=1 // pred_check
      _
    $region31: #{tpu_custom_call.1} parent=1 // pred_check_branch
      %152 = sbr.rel (0) target = $region33
    $region32: #{tpu_custom_call.1} parent=1 // pred_region
      %154 = vsyncadd [#allocation10], 0
      %s155 = sshll.u32 [#allocation9], 4
      %s156 = int_to_ptr.vmem [resolvable:$true] %s155
      %s157 = sshll.u32 %s5, 4
      %s158 = int_to_ptr.hbm [resolvable:$true] %s157
      %163 = dma.vmem_to_hbm [thread:$0]  %s156, 128, %s158, [#allocation10], 64, 64, 4
    $region33: #{tpu_custom_call.1} parent=1 // pred_fallthru
      _
    // Predicated region
    $region34: #{tpu_custom_call.1} parent=1 // pred_check
      _
    $region35: #{tpu_custom_call.1} parent=1 // pred_check_branch
      %165 = sbr.rel (0) target = $region37
    $region36: #{tpu_custom_call.1} parent=1 // pred_region
      %167 = dma.done [#allocation5], 256
    $region37: #{tpu_custom_call.1} parent=1 // pred_fallthru
      _
    // Predicated region
    $region38: #{tpu_custom_call.1} parent=1 // pred_check
      _
    $region39: #{tpu_custom_call.1} parent=1 // pred_check_branch
      %169 = sbr.rel (0) target = $region41
    $region40: #{tpu_custom_call.1} parent=1 // pred_region
      %171 = dma.done [#allocation10], 128
    $region41: #{tpu_custom_call.1} parent=1 // pred_fallthru
      _
    %172 = vsyncpa [#allocation4], 1
    %173 = vsyncpa [#allocation7], 1
    %174 = vsyncpa [#allocation5], 1
    %175 = vsyncpa [#allocation10], 1

</llo_original>
